<compile_context>
chip_gen: v6e
topology: v6e:2x2x1
jax: 0.10.0
libtpu: 0.0.40
codegen_flags: <defaults>
</compile_context>

<pallas_src>
import jax
import jax.numpy as jnp
from jax.experimental import pallas as pl
from jax.experimental.pallas import tpu as pltpu

NUM_CLASSES = 10
NEG_RATIO = 3


def _multibox_partial_kernel(loc_ref, logit_ref, gt_loc_ref, label_ref, out_ref):
    # Per-batch blocks:
    #   loc_ref    : (1, 4, A)   f32
    #   logit_ref  : (1, C, A)   f32
    #   gt_loc_ref : (1, 4, A)   f32
    #   label_ref  : (1, 1, A)   int32
    #   out_ref    : (1, 1, 128) f32   lanes: [loc_sum, cls_sum, num_pos, 0...]
    pred_loc = loc_ref[0].astype(jnp.float32)        # (4, A)
    gt_loc = gt_loc_ref[0].astype(jnp.float32)       # (4, A)
    logits = logit_ref[0].astype(jnp.float32)        # (C, A)
    labels = label_ref[0]                            # (1, A) int32

    C, A = logits.shape

    pos = labels > 0                                  # (1, A)
    pos_f = pos.astype(jnp.float32)

    # ---- smooth-L1 localization loss over positive anchors (reduction='sum')
    # Mask the diff first: smooth_l1(0) == 0, so negatives contribute nothing,
    # and the whole path is flat elementwise + one full reduce.
    d = (pred_loc - gt_loc) * pos_f                   # (4, A)
    ad = jnp.abs(d)
    sl1 = jnp.where(ad < 1.0, 0.5 * d * d, ad - 0.5)
    loc_sum = jnp.sum(sl1)                            # scalar

    # ---- per-anchor cross entropy (classes on the sublane axis)
    m = jnp.max(logits, axis=0, keepdims=True)                             # (1, A)
    lse = m + jnp.log(jnp.sum(jnp.exp(logits - m), axis=0, keepdims=True))  # (1, A)
    cls_iota = jax.lax.broadcasted_iota(jnp.int32, (C, A), 0)
    onehot = (cls_iota == labels).astype(jnp.float32)                       # (C, A)
    true_logit = jnp.sum(logits * onehot, axis=0, keepdims=True)            # (1, A)
    ce = lse - true_logit                                                   # (1, A)

    # ---- hard negative mining: stable descending-sort rank via pairwise counts
    # rank[i] = #{j: mine[j] > mine[i]} + #{j < i: mine[j] == mine[i]}
    # TODO(synk): for production anchor counts (A ~ 8732) replace this O(A^2)
    # pairwise rank with a threshold / top-k selection, or tile it over j.
    mine = jnp.where(pos, 0.0, ce)                    # (1, A)
    mine_i = jnp.broadcast_to(mine, (A, A))           # [j, i] = mine[i]
    mine_j = mine_i.T                                  # [j, i] = mine[j]
    j_idx = jax.lax.broadcasted_iota(jnp.int32, (A, A), 0)
    i_idx = jax.lax.broadcasted_iota(jnp.int32, (A, A), 1)
    tie_break = j_idx < i_idx                          # stable-sort tie break
    mask = jnp.logical_or(
        mine_j > mine_i,
        jnp.logical_and(mine_j == mine_i, tie_break)).astype(jnp.float32)   # (A_j, A_i)
    # Reduce over sublanes on the MXU: rank[i] = sum_j mask[j, i].
    ones8 = jnp.ones((8, A), jnp.float32)
    rank = jnp.dot(ones8, mask, preferred_element_type=jnp.float32)[0:1, :]  # (1, A)

    num_pos = jnp.sum(pos_f)                                                 # scalar
    num_neg = jnp.minimum(NEG_RATIO * num_pos, jnp.float32(A - 1))
    neg = rank < num_neg                                                     # (1, A)

    # ---- classification loss over (pos | neg) anchors (reduction='sum')
    sel = jnp.logical_or(pos, neg)
    cls_sum = jnp.sum(jnp.where(sel, ce, 0.0))

    # ---- pack the three partials into one lane-dense output row
    lane = jax.lax.broadcasted_iota(jnp.int32, (1, 1, 128), 2)
    out = (jnp.where(lane == 0, loc_sum, 0.0)
           + jnp.where(lane == 1, cls_sum, 0.0)
           + jnp.where(lane == 2, num_pos, 0.0))
    out_ref[...] = out


def multibox_loss(pred_loc, pred_label, gt_loc, gt_label):
    """Returns (loc_loss, cls_loss) scalars, matching MultiBoxLoss.forward."""
    B, A, C = pred_label.shape

    # Lane-dense relayout: anchors on the minor (lane) axis.
    loc_t = jnp.transpose(pred_loc.astype(jnp.float32), (0, 2, 1))        # (B, 4, A)
    gt_loc_t = jnp.transpose(gt_loc.astype(jnp.float32), (0, 2, 1))       # (B, 4, A)
    logits_t = jnp.transpose(pred_label.astype(jnp.float32), (0, 2, 1))   # (B, C, A)
    labels = gt_label.astype(jnp.int32).reshape(B, 1, A)                   # (B, 1, A)

    partials = pl.pallas_call(
        _multibox_partial_kernel,
        out_shape=jax.ShapeDtypeStruct((B, 1, 128), jnp.float32),
        grid_spec=pltpu.PrefetchScalarGridSpec(
            num_scalar_prefetch=0,
            grid=(B,),
            in_specs=[
                pl.BlockSpec((1, 4, A), lambda b: (b, 0, 0)),
                pl.BlockSpec((1, C, A), lambda b: (b, 0, 0)),
                pl.BlockSpec((1, 4, A), lambda b: (b, 0, 0)),
                pl.BlockSpec((1, 1, A), lambda b: (b, 0, 0)),
            ],
            out_specs=pl.BlockSpec((1, 1, 128), lambda b: (b, 0, 0)),
        ),
        compiler_params=pltpu.CompilerParams(
            dimension_semantics=("parallel",)),
    )(loc_t, logits_t, gt_loc_t, labels)

    loc_sum = jnp.sum(partials[:, 0, 0])
    cls_sum = jnp.sum(partials[:, 0, 1])
    n = jnp.sum(partials[:, 0, 2])   # total number of positive anchors
    # NOTE: division by zero (no positives anywhere) -> inf/nan, same as PyTorch.
    return loc_sum / n, cls_sum / n


def _reference(pred_loc, pred_label, gt_loc, gt_label):
    """Pure-JAX reference of the PyTorch forward (same stable-rank tie break)."""
    B, A, C = pred_label.shape
    pos = gt_label > 0
    d = pred_loc - gt_loc
    ad = jnp.abs(d)
    sl1 = jnp.where(ad < 1.0, 0.5 * d * d, ad - 0.5).sum(-1)
    loc_loss = jnp.sum(jnp.where(pos, sl1, 0.0))
    lse = jax.scipy.special.logsumexp(pred_label, axis=-1)
    true_logit = jnp.take_along_axis(pred_label, gt_label[..., None], axis=-1)[..., 0]
    ce = lse - true_logit
    mine = jnp.where(pos, 0.0, ce)
    li, lj = mine[:, :, None], mine[:, None, :]
    i_idx = jnp.arange(A)[None, :, None]
    j_idx = jnp.arange(A)[None, None, :]
    rank = jnp.sum((lj > li) | ((lj == li) & (j_idx < i_idx)), axis=-1)
    num_pos = jnp.sum(pos, axis=1, keepdims=True)
    num_neg = jnp.minimum(NEG_RATIO * num_pos, A - 1)
    neg = rank < num_neg
    cls_loss = jnp.sum(jnp.where(pos | neg, ce, 0.0))
    n = jnp.sum(pos).astype(jnp.float32)
    return loc_loss / n, cls_loss / n


if __name__ == "__main__":
    B, A, C = 2, 128, NUM_CLASSES
    key = jax.random.PRNGKey(0)
    k1, k2, k3, k4 = jax.random.split(key, 4)

    pred_loc = jax.random.normal(k1, (B, A, 4), dtype=jnp.float32)
    pred_label = jax.random.normal(k2, (B, A, C), dtype=jnp.float32)
    gt_loc = jax.random.normal(k3, (B, A, 4), dtype=jnp.float32)
    # mostly background (label 0) with a sprinkle of positive classes
    raw = jax.random.randint(k4, (B, A), 0, 4 * C)
    gt_label = jnp.where(raw < C, raw, 0).astype(jnp.int32)  # guarantees some positives

    loc_loss, cls_loss = multibox_loss(pred_loc, pred_label, gt_loc, gt_label)
    jax.block_until_ready((loc_loss, cls_loss))

    ref_loc, ref_cls = _reference(pred_loc, pred_label, gt_loc, gt_label)
    assert jnp.allclose(loc_loss, ref_loc, rtol=1e-4, atol=1e-4), (loc_loss, ref_loc)
    assert jnp.allclose(cls_loss, ref_cls, rtol=1e-4, atol=1e-4), (cls_loss, ref_cls)

    print("KERNEL_OK")
</pallas_src>

<mosaic_0001>
module attributes {stable_mosaic.version = 11 : i64} {
  func.func @_multibox_partial_kernel(%arg0: i32, %arg1: memref<1x4x128xf32, #tpu.memory_space<vmem>>, %arg2: memref<1x10x128xf32, #tpu.memory_space<vmem>>, %arg3: memref<1x4x128xf32, #tpu.memory_space<vmem>>, %arg4: memref<1x1x128xi32, #tpu.memory_space<vmem>>, %arg5: memref<1x1x128xf32, #tpu.memory_space<vmem>>) attributes {dimension_semantics = [#tpu.dimension_semantics<parallel>], iteration_bounds = array<i64: 2>, scalar_prefetch = 0 : i64, scratch_operands = 0 : i64, tpu.core_type = #tpu.core_type<tc>, window_params = [{transform_indices = @transform_0, window_bounds = array<i64: 1, 4, 128>}, {transform_indices = @transform_1, window_bounds = array<i64: 1, 10, 128>}, {transform_indices = @transform_2, window_bounds = array<i64: 1, 4, 128>}, {transform_indices = @transform_3, window_bounds = array<i64: 1, 1, 128>}, {transform_indices = @transform_4, window_bounds = array<i64: 1, 1, 128>}]} {
    %c0 = arith.constant 0 : index
    %c0_0 = arith.constant 0 : index
    %c0_1 = arith.constant 0 : index
    %0 = vector.load %arg1[%c0, %c0_0, %c0_1] : memref<1x4x128xf32, #tpu.memory_space<vmem>>, vector<1x4x128xf32>
    %1 = vector.shape_cast %0 : vector<1x4x128xf32> to vector<4x128xf32>
    %c0_2 = arith.constant 0 : index
    %c0_3 = arith.constant 0 : index
    %c0_4 = arith.constant 0 : index
    %2 = vector.load %arg3[%c0_2, %c0_3, %c0_4] : memref<1x4x128xf32, #tpu.memory_space<vmem>>, vector<1x4x128xf32>
    %3 = vector.shape_cast %2 : vector<1x4x128xf32> to vector<4x128xf32>
    %c0_5 = arith.constant 0 : index
    %c0_6 = arith.constant 0 : index
    %c0_7 = arith.constant 0 : index
    %4 = vector.load %arg2[%c0_5, %c0_6, %c0_7] : memref<1x10x128xf32, #tpu.memory_space<vmem>>, vector<1x10x128xf32>
    %5 = vector.shape_cast %4 : vector<1x10x128xf32> to vector<10x128xf32>
    %c0_8 = arith.constant 0 : index
    %c0_9 = arith.constant 0 : index
    %c0_10 = arith.constant 0 : index
    %6 = vector.load %arg4[%c0_8, %c0_9, %c0_10] : memref<1x1x128xi32, #tpu.memory_space<vmem>>, vector<1x1x128xi32>
    %7 = vector.shape_cast %6 : vector<1x1x128xi32> to vector<1x128xi32>
    %c0_i32 = arith.constant 0 : i32
    %8 = vector.broadcast %c0_i32 : i32 to vector<1x128xi32>
    %9 = arith.cmpi sgt, %7, %8 : vector<1x128xi32>
    %10 = arith.extui %9 : vector<1x128xi1> to vector<1x128xi32>
    %11 = arith.sitofp %10 : vector<1x128xi32> to vector<1x128xf32>
    %12 = arith.subf %1, %3 : vector<4x128xf32>
    %13 = vector.broadcast %11 : vector<1x128xf32> to vector<4x128xf32>
    %14 = arith.mulf %12, %13 : vector<4x128xf32>
    %15 = math.absf %14 : vector<4x128xf32>
    %cst = arith.constant 1.000000e+00 : f32
    %16 = vector.broadcast %cst : f32 to vector<4x128xf32>
    %17 = arith.cmpf olt, %15, %16 : vector<4x128xf32>
    %cst_11 = arith.constant 5.000000e-01 : f32
    %18 = vector.broadcast %cst_11 : f32 to vector<4x128xf32>
    %19 = arith.mulf %18, %14 : vector<4x128xf32>
    %20 = arith.mulf %19, %14 : vector<4x128xf32>
    %cst_12 = arith.constant 5.000000e-01 : f32
    %21 = vector.broadcast %cst_12 : f32 to vector<4x128xf32>
    %22 = arith.subf %15, %21 : vector<4x128xf32>
    %23 = arith.select %17, %20, %22 : vector<4x128xi1>, vector<4x128xf32>
    %24 = vector.shape_cast %23 : vector<4x128xf32> to vector<1x4x128xf32>
    %cst_13 = arith.constant dense<0.000000e+00> : vector<1xf32>
    %25 = vector.multi_reduction <add>, %24, %cst_13 [1, 2] : vector<1x4x128xf32> to vector<1xf32>
    %26 = vector.shape_cast %25 : vector<1xf32> to vector<1x1x1xf32>
    %27 = vector.extract %26[0, 0, 0] : f32 from vector<1x1x1xf32>
    %cst_14 = arith.constant dense<0xFF800000> : vector<128xf32>
    %28 = vector.multi_reduction <maximumf>, %5, %cst_14 [0] : vector<10x128xf32> to vector<128xf32>
    %29 = vector.shape_cast %28 : vector<128xf32> to vector<1x128xf32>
    %30 = vector.broadcast %29 : vector<1x128xf32> to vector<10x128xf32>
    %31 = arith.subf %5, %30 : vector<10x128xf32>
    %32 = math.exp %31 : vector<10x128xf32>
    %cst_15 = arith.constant dense<0.000000e+00> : vector<128xf32>
    %33 = vector.multi_reduction <add>, %32, %cst_15 [0] : vector<10x128xf32> to vector<128xf32>
    %34 = vector.shape_cast %33 : vector<128xf32> to vector<1x128xf32>
    %35 = math.log %34 : vector<1x128xf32>
    %36 = arith.addf %29, %35 : vector<1x128xf32>
    %37 = tpu.iota {dimensions = array<i32: 0>} : vector<10x128xi32>
    %38 = vector.broadcast %7 : vector<1x128xi32> to vector<10x128xi32>
    %39 = arith.cmpi eq, %37, %38 : vector<10x128xi32>
    %40 = arith.extui %39 : vector<10x128xi1> to vector<10x128xi32>
    %41 = arith.sitofp %40 : vector<10x128xi32> to vector<10x128xf32>
    %42 = arith.mulf %5, %41 : vector<10x128xf32>
    %cst_16 = arith.constant dense<0.000000e+00> : vector<128xf32>
    %43 = vector.multi_reduction <add>, %42, %cst_16 [0] : vector<10x128xf32> to vector<128xf32>
    %44 = vector.shape_cast %43 : vector<128xf32> to vector<1x128xf32>
    %45 = arith.subf %36, %44 : vector<1x128xf32>
    %cst_17 = arith.constant 0.000000e+00 : f32
    %46 = vector.broadcast %cst_17 : f32 to vector<1x128xf32>
    %47 = arith.select %9, %46, %45 : vector<1x128xi1>, vector<1x128xf32>
    %48 = vector.shape_cast %47 : vector<1x128xf32> to vector<1x128xf32>
    %49 = vector.broadcast %48 : vector<1x128xf32> to vector<128x128xf32>
    %50 = tpu.transpose %49, [1, 0] : vector<128x128xf32> -> vector<128x128xf32>
    %51 = tpu.iota {dimensions = array<i32: 0>} : vector<128x128xi32>
    %52 = tpu.iota {dimensions = array<i32: 1>} : vector<128x128xi32>
    %53 = arith.cmpi slt, %51, %52 : vector<128x128xi32>
    %54 = arith.cmpf ogt, %50, %49 : vector<128x128xf32>
    %55 = arith.cmpf oeq, %50, %49 : vector<128x128xf32>
    %56 = arith.andi %55, %53 : vector<128x128xi1>
    %57 = arith.ori %54, %56 : vector<128x128xi1>
    %58 = arith.extui %57 : vector<128x128xi1> to vector<128x128xi32>
    %59 = arith.sitofp %58 : vector<128x128xi32> to vector<128x128xf32>
    %cst_18 = arith.constant 1.000000e+00 : f32
    %60 = vector.broadcast %cst_18 : f32 to vector<8x128xf32>
    %cst_19 = arith.constant dense<0.000000e+00> : vector<8x128xf32>
    %61 = tpu.matmul %60, %59, %cst_19 {dimension_numbers = #tpu.dot_dimension_numbers<[1], [0], [0], [1], [0, 0, 1, 1], [], []>} : vector<8x128xf32>, vector<128x128xf32>, vector<8x128xf32> -> vector<8x128xf32>
    %62 = vector.extract_strided_slice %61 {offsets = [0, 0], sizes = [1, 128], strides = [1, 1]} : vector<8x128xf32> to vector<1x128xf32>
    %63 = vector.shape_cast %11 : vector<1x128xf32> to vector<1x1x128xf32>
    %cst_20 = arith.constant dense<0.000000e+00> : vector<1xf32>
    %64 = vector.multi_reduction <add>, %63, %cst_20 [1, 2] : vector<1x1x128xf32> to vector<1xf32>
    %65 = vector.shape_cast %64 : vector<1xf32> to vector<1x1x1xf32>
    %66 = vector.extract %65[0, 0, 0] : f32 from vector<1x1x1xf32>
    %cst_21 = arith.constant 3.000000e+00 : f32
    %67 = arith.mulf %cst_21, %66 : f32
    %cst_22 = arith.constant 1.270000e+02 : f32
    %68 = arith.minimumf %67, %cst_22 : f32
    %69 = vector.broadcast %68 : f32 to vector<1x128xf32>
    %70 = arith.cmpf olt, %62, %69 : vector<1x128xf32>
    %71 = arith.ori %9, %70 : vector<1x128xi1>
    %cst_23 = arith.constant 0.000000e+00 : f32
    %72 = vector.broadcast %cst_23 : f32 to vector<1x128xf32>
    %73 = arith.select %71, %45, %72 : vector<1x128xi1>, vector<1x128xf32>
    %74 = vector.shape_cast %73 : vector<1x128xf32> to vector<1x1x128xf32>
    %cst_24 = arith.constant dense<0.000000e+00> : vector<1xf32>
    %75 = vector.multi_reduction <add>, %74, %cst_24 [1, 2] : vector<1x1x128xf32> to vector<1xf32>
    %76 = vector.shape_cast %75 : vector<1xf32> to vector<1x1x1xf32>
    %77 = vector.extract %76[0, 0, 0] : f32 from vector<1x1x1xf32>
    %78 = tpu.iota {dimensions = array<i32: 2>} : vector<1x1x128xi32>
    %c0_i32_25 = arith.constant 0 : i32
    %79 = vector.broadcast %c0_i32_25 : i32 to vector<1x1x128xi32>
    %80 = arith.cmpi eq, %78, %79 : vector<1x1x128xi32>
    %cst_26 = arith.constant 0.000000e+00 : f32
    %81 = vector.broadcast %27 : f32 to vector<1x1x128xf32>
    %82 = vector.broadcast %cst_26 : f32 to vector<1x1x128xf32>
    %83 = arith.select %80, %81, %82 : vector<1x1x128xi1>, vector<1x1x128xf32>
    %c1_i32 = arith.constant 1 : i32
    %84 = vector.broadcast %c1_i32 : i32 to vector<1x1x128xi32>
    %85 = arith.cmpi eq, %78, %84 : vector<1x1x128xi32>
    %cst_27 = arith.constant 0.000000e+00 : f32
    %86 = vector.broadcast %77 : f32 to vector<1x1x128xf32>
    %87 = vector.broadcast %cst_27 : f32 to vector<1x1x128xf32>
    %88 = arith.select %85, %86, %87 : vector<1x1x128xi1>, vector<1x1x128xf32>
    %89 = arith.addf %83, %88 : vector<1x1x128xf32>
    %c2_i32 = arith.constant 2 : i32
    %90 = vector.broadcast %c2_i32 : i32 to vector<1x1x128xi32>
    %91 = arith.cmpi eq, %78, %90 : vector<1x1x128xi32>
    %cst_28 = arith.constant 0.000000e+00 : f32
    %92 = vector.broadcast %66 : f32 to vector<1x1x128xf32>
    %93 = vector.broadcast %cst_28 : f32 to vector<1x1x128xf32>
    %94 = arith.select %91, %92, %93 : vector<1x1x128xi1>, vector<1x1x128xf32>
    %95 = arith.addf %89, %94 : vector<1x1x128xf32>
    %c0_29 = arith.constant 0 : index
    %c0_30 = arith.constant 0 : index
    %c0_31 = arith.constant 0 : index
    %96 = vector.load %arg5[%c0_29, %c0_30, %c0_31] : memref<1x1x128xf32, #tpu.memory_space<vmem>>, vector<1x1x128xf32>
    tpu.vector_store %arg5[%c0_29, %c0_30, %c0_31], %95 {strides = array<i32>} : memref<1x1x128xf32, #tpu.memory_space<vmem>>, vector<1x1x128xf32>,
    return
  }
  func.func @transform_0(%arg0: i32) -> (i32, i32, i32) {
    %c0_i32 = arith.constant 0 : i32
    %c0_i32_0 = arith.constant 0 : i32
    %c0_i32_1 = arith.constant 0 : i32
    return %arg0, %c0_i32, %c0_i32_0 : i32, i32, i32
  }
  func.func @transform_1(%arg0: i32) -> (i32, i32, i32) {
    %c0_i32 = arith.constant 0 : i32
    %c0_i32_0 = arith.constant 0 : i32
    %c0_i32_1 = arith.constant 0 : i32
    return %arg0, %c0_i32, %c0_i32_0 : i32, i32, i32
  }
  func.func @transform_2(%arg0: i32) -> (i32, i32, i32) {
    %c0_i32 = arith.constant 0 : i32
    %c0_i32_0 = arith.constant 0 : i32
    %c0_i32_1 = arith.constant 0 : i32
    return %arg0, %c0_i32, %c0_i32_0 : i32, i32, i32
  }
  func.func @transform_3(%arg0: i32) -> (i32, i32, i32) {
    %c0_i32 = arith.constant 0 : i32
    %c0_i32_0 = arith.constant 0 : i32
    %c0_i32_1 = arith.constant 0 : i32
    return %arg0, %c0_i32, %c0_i32_0 : i32, i32, i32
  }
  func.func @transform_4(%arg0: i32) -> (i32, i32, i32) {
    %c0_i32 = arith.constant 0 : i32
    %c0_i32_0 = arith.constant 0 : i32
    %c0_i32_1 = arith.constant 0 : i32
    return %arg0, %c0_i32, %c0_i32_0 : i32, i32, i32
  }
}

</mosaic_0001>

<llo_original>
// kernel: tpu_custom_call.1
$region0: #{tpu_custom_call.1}
  #allocation0 [shape = 'u32[]', space=smem, size = 0x4, offset = 0x4, fixed_abs, tag = 'smem constant byte address 0x4 - core index']
  #allocation1 [shape = 'u32[144,128]{1,0:T(1,128)}', space=vmem, size = 0x12000, scoped, tag = 'internal scratch']
  %s0 = inlined_call_operand.vmem [shape: f32[2,4,128], index: 0, kind: input, shape index: {}]
  %s1 = inlined_call_operand.vmem [shape: f32[2,10,128], index: 1, kind: input, shape index: {}]
  %s2 = inlined_call_operand.vmem [shape: f32[2,4,128], index: 2, kind: input, shape index: {}]
  %s3 = inlined_call_operand.vmem [shape: s32[2,1,128], index: 3, kind: input, shape index: {}]
  %s4 = inlined_call_operand.hbm [shape: f32[2,1,128], index: 4, kind: output, shape index: {}]
  %s5 = sld [smem:[#allocation0]]
  $region49: #{tpu_custom_call.1} parent=0
    _
  %s7 = ssub.s32 1, %s5
  %s8 = scalar_select 0, %s7, %s5
  $region1: #{tpu_custom_call.1} parent=0
    #allocation2 [shape = 'u8[1024]{0}', space=vmem, size = 0x400, scoped, tag = 'output window, operand 0']
    #allocation3 [shape = 's32[2]{0}', space=sflag, size = 0x8, scoped, tag = 'scoped memory for tpu_custom_call.1']
    %9 = vsyncpa [#allocation3], 0
    %s10 = scalar_lea.sflag [#allocation3], 1
    %11 = vsyncpa %s10, 0
    loop: start=0, step=1, limit=4
    $region2: #{tpu_custom_call.1} parent=1 // loop_pre_header
      _
    $region3: #{tpu_custom_call.1} parent=1 // loop_header
      %s13 = sphi 0, %s17
      %p14 = scmp.ge.s32.totalorder %s13, 4
      %s23 = sphi 0, %s25
      %s26 = sphi 0, %s23
      %s27 = sphi 0, %s26
      %s43 = sphi 0, %s27
      %s49 = sphi 0, %s51
      %s52 = sphi 0, %s49
      %s53 = sphi 0, %s52
      %s69 = sphi 0, %s53
      %s75 = sphi 0, %s77
      %s78 = sphi 0, %s75
      %s79 = sphi 0, %s78
      %s95 = sphi 0, %s79
      %s101 = sphi 0, %s103
      %s104 = sphi 0, %s101
      %s105 = sphi 0, %s104
      %s121 = sphi 0, %s105
      %s127 = sphi 0, %s129
      %s130 = sphi 0, %s127
      %s131 = sphi 0, %s130
      %s147 = sphi 0, %s131
    $region4: #{tpu_custom_call.1} parent=1 // loop_header_branch
      %16 = sbr.rel (%p14) target = $region8
    $region5: #{tpu_custom_call.1} parent=1 // loop_body
      %s18 = ssub.s32 %s13, 1
      %s19 = ssub.s32 %s13, 2
      %s20 = sadd.s32 %s13, 1
      %s21 = ssub.s32 %s13, %s20
      %p22 = scmp.eq.s32.totalorder %s21, 0
      %s24 = sadd.s32 %s23, 1
      %s25 = scalar_select %p22, %s23, %s24
      %p28 = pneg %p22
      %p29 = scmp.eq.s32.totalorder %s13, 1
      %p30 = por %p28, %p29
      %p31 = scmp.ne.s32.totalorder %s23, %s26
      %p32 = scmp.eq.s32.totalorder %s13, 0
      %p33 = por %p31, %p32
      %p34 = scmp.ne.s32.totalorder %s23, %s26
      %p35 = scmp.eq.s32.totalorder %s18, 1
      %p36 = por %p34, %p35
      %p37 = scmp.ne.s32.totalorder %s26, %s27
      %p38 = scmp.eq.s32.totalorder %s18, 0
      %p39 = por %p37, %p38
      %p40 = scmp.ne.s32.totalorder %s26, %s27
      %p41 = scmp.eq.s32.totalorder %s19, 1
      %p42 = por %p40, %p41
      %p44 = scmp.ne.s32.totalorder %s27, %s43
      %p45 = scmp.eq.s32.totalorder %s19, 0
      %p46 = por %p44, %p45
      %s47 = ssub.s32 %s13, %s20
      %p48 = scmp.eq.s32.totalorder %s47, 0
      %s50 = sadd.s32 %s49, 1
      %s51 = scalar_select %p48, %s49, %s50
      %p54 = pneg %p48
      %p55 = scmp.eq.s32.totalorder %s13, 1
      %p56 = por %p54, %p55
      %p57 = scmp.ne.s32.totalorder %s49, %s52
      %p58 = scmp.eq.s32.totalorder %s13, 0
      %p59 = por %p57, %p58
      %p60 = scmp.ne.s32.totalorder %s49, %s52
      %p61 = scmp.eq.s32.totalorder %s18, 1
      %p62 = por %p60, %p61
      %p63 = scmp.ne.s32.totalorder %s52, %s53
      %p64 = scmp.eq.s32.totalorder %s18, 0
      %p65 = por %p63, %p64
      %p66 = scmp.ne.s32.totalorder %s52, %s53
      %p67 = scmp.eq.s32.totalorder %s19, 1
      %p68 = por %p66, %p67
      %p70 = scmp.ne.s32.totalorder %s53, %s69
      %p71 = scmp.eq.s32.totalorder %s19, 0
      %p72 = por %p70, %p71
      %s73 = ssub.s32 %s13, %s20
      %p74 = scmp.eq.s32.totalorder %s73, 0
      %s76 = sadd.s32 %s75, 1
      %s77 = scalar_select %p74, %s75, %s76
      %p80 = pneg %p74
      %p81 = scmp.eq.s32.totalorder %s13, 1
      %p82 = por %p80, %p81
      %p83 = scmp.ne.s32.totalorder %s75, %s78
      %p84 = scmp.eq.s32.totalorder %s13, 0
      %p85 = por %p83, %p84
      %p86 = scmp.ne.s32.totalorder %s75, %s78
      %p87 = scmp.eq.s32.totalorder %s18, 1
      %p88 = por %p86, %p87
      %p89 = scmp.ne.s32.totalorder %s78, %s79
      %p90 = scmp.eq.s32.totalorder %s18, 0
      %p91 = por %p89, %p90
      %p92 = scmp.ne.s32.totalorder %s78, %s79
      %p93 = scmp.eq.s32.totalorder %s19, 1
      %p94 = por %p92, %p93
      %p96 = scmp.ne.s32.totalorder %s79, %s95
      %p97 = scmp.eq.s32.totalorder %s19, 0
      %p98 = por %p96, %p97
      %s99 = ssub.s32 %s13, %s20
      %p100 = scmp.eq.s32.totalorder %s99, 0
      %s102 = sadd.s32 %s101, 1
      %s103 = scalar_select %p100, %s101, %s102
      %p106 = pneg %p100
      %p107 = scmp.eq.s32.totalorder %s13, 1
      %p108 = por %p106, %p107
      %p109 = scmp.ne.s32.totalorder %s101, %s104
      %p110 = scmp.eq.s32.totalorder %s13, 0
      %p111 = por %p109, %p110
      %p112 = scmp.ne.s32.totalorder %s101, %s104
      %p113 = scmp.eq.s32.totalorder %s18, 1
      %p114 = por %p112, %p113
      %p115 = scmp.ne.s32.totalorder %s104, %s105
      %p116 = scmp.eq.s32.totalorder %s18, 0
      %p117 = por %p115, %p116
      %p118 = scmp.ne.s32.totalorder %s104, %s105
      %p119 = scmp.eq.s32.totalorder %s19, 1
      %p120 = por %p118, %p119
      %p122 = scmp.ne.s32.totalorder %s105, %s121
      %p123 = scmp.eq.s32.totalorder %s19, 0
      %p124 = por %p122, %p123
      %s125 = ssub.s32 %s13, %s20
      %p126 = scmp.eq.s32.totalorder %s125, 0
      %s128 = sadd.s32 %s127, 1
      %s129 = scalar_select %p126, %s127, %s128
      %p132 = pneg %p126
      %p133 = scmp.eq.s32.totalorder %s13, 1
      %p134 = por %p132, %p133
      %p135 = scmp.ne.s32.totalorder %s127, %s130
      %p136 = scmp.eq.s32.totalorder %s13, 0
      %p137 = por %p135, %p136
      %p138 = scmp.ne.s32.totalorder %s127, %s130
      %p139 = scmp.eq.s32.totalorder %s18, 1
      %p140 = por %p138, %p139
      %p141 = scmp.ne.s32.totalorder %s130, %s131
      %p142 = scmp.eq.s32.totalorder %s18, 0
      %p143 = por %p141, %p142
      %p144 = scmp.ne.s32.totalorder %s130, %s131
      %p145 = scmp.eq.s32.totalorder %s19, 1
      %p146 = por %p144, %p145
      %p148 = scmp.ne.s32.totalorder %s131, %s147
      %p149 = scmp.eq.s32.totalorder %s19, 0
      %p150 = por %p148, %p149
      %p151 = scmp.le.s32.totalorder 1, %s13
      %p152 = scmp.lt.s32.totalorder %s13, 3
      %p153 = pnand %p151, %p152
      %p154 = pneg %p153
      // Predicated region
      $region9: #{tpu_custom_call.1} parent=5 // pred_check
        _
      $region10: #{tpu_custom_call.1} parent=5 // pred_check_branch
        %156 = sbr.rel (%p153) target = $region12
      $region11: #{tpu_custom_call.1} parent=5 // pred_region
        %s157 = ssub.s32 %s13, 1
      $region12: #{tpu_custom_call.1} parent=5 // pred_fallthru
        _
      %p158 = scmp.lt.s32.totalorder %s13, 2
      // Predicated region
      $region13: #{tpu_custom_call.1} parent=5 // pred_check
        %p159 = pneg %p158
      $region14: #{tpu_custom_call.1} parent=5 // pred_check_branch
        %161 = sbr.rel (%p159) target = $region16
      $region15: #{tpu_custom_call.1} parent=5 // pred_region
        // Predicated region
        $region17: #{tpu_custom_call.1} parent=15 // pred_check
          %p162 = pneg %p33
        $region18: #{tpu_custom_call.1} parent=15 // pred_check_branch
          %164 = sbr.rel (%p162) target = $region20
        $region19: #{tpu_custom_call.1} parent=15 // pred_region
          %p165 = scmp.lt.s32.totalorder %s13, 1
          %s166 = scalar_select %p165, %s13, 1
          %s167 = smul.addr %s166, 4
          %s168 = scalar_lea.vmem %s0, %s167
        $region20: #{tpu_custom_call.1} parent=15 // pred_fallthru
          _
        // Predicated region
        $region21: #{tpu_custom_call.1} parent=15 // pred_check
          %p169 = pneg %p59
        $region22: #{tpu_custom_call.1} parent=15 // pred_check_branch
          %171 = sbr.rel (%p169) target = $region24
        $region23: #{tpu_custom_call.1} parent=15 // pred_region
          %p172 = scmp.lt.s32.totalorder %s13, 1
          %s173 = scalar_select %p172, %s13, 1
          %s174 = smul.addr %s173, 2
          %s175 = smul.addr %s174, 8
          %s176 = scalar_lea.vmem %s1, %s175
        $region24: #{tpu_custom_call.1} parent=15 // pred_fallthru
          _
        // Predicated region
        $region25: #{tpu_custom_call.1} parent=15 // pred_check
          %p177 = pneg %p85
        $region26: #{tpu_custom_call.1} parent=15 // pred_check_branch
          %179 = sbr.rel (%p177) target = $region28
        $region27: #{tpu_custom_call.1} parent=15 // pred_region
          %p180 = scmp.lt.s32.totalorder %s13, 1
          %s181 = scalar_select %p180, %s13, 1
          %s182 = smul.addr %s181, 4
          %s183 = scalar_lea.vmem %s2, %s182
        $region28: #{tpu_custom_call.1} parent=15 // pred_fallthru
          _
        // Predicated region
        $region29: #{tpu_custom_call.1} parent=15 // pred_check
          %p184 = pneg %p111
        $region30: #{tpu_custom_call.1} parent=15 // pred_check_branch
          %186 = sbr.rel (%p184) target = $region32
        $region31: #{tpu_custom_call.1} parent=15 // pred_region
          %p187 = scmp.lt.s32.totalorder %s13, 1
          %s188 = scalar_select %p187, %s13, 1
          %s189 = scalar_lea.vmem %s3, %s188
        $region32: #{tpu_custom_call.1} parent=15 // pred_fallthru
          _
      $region16: #{tpu_custom_call.1} parent=5 // pred_fallthru
        _
      %p190 = scmp.le.s32.totalorder 1, %s13
      %p191 = scmp.lt.s32.totalorder %s13, 3
      %p192 = pnand %p190, %p191
      %p193 = pneg %p192
      // Predicated region
      $region33: #{tpu_custom_call.1} parent=5 // pred_check
        _
      $region34: #{tpu_custom_call.1} parent=5 // pred_check_branch
        %195 = sbr.rel (%p192) target = $region36
      $region35: #{tpu_custom_call.1} parent=5 // pred_region
        %s196 = ssub.s32 %s13, 1
        %p197 = scmp.lt.s32.totalorder %s18, 1
        %s198 = scalar_select %p197, %s18, 1
        %s199 = smul.addr %s198, 4
        %s200 = scalar_lea.vmem %s0, %s199
        %p201 = pneg %p39
        %p202 = pneg %p36
        %p203 = scmp.lt.s32.totalorder %s18, 1
        %s204 = scalar_select %p203, %s18, 1
        %s205 = smul.addr %s204, 2
        %s206 = smul.addr %s205, 8
        %s207 = scalar_lea.vmem %s1, %s206
        %p208 = pneg %p65
        %p209 = pneg %p62
        %p210 = scmp.lt.s32.totalorder %s18, 1
        %s211 = scalar_select %p210, %s18, 1
        %s212 = smul.addr %s211, 4
        %s213 = scalar_lea.vmem %s2, %s212
        %p214 = pneg %p91
        %p215 = pneg %p88
        %p216 = scmp.lt.s32.totalorder %s18, 1
        %s217 = scalar_select %p216, %s18, 1
        %s218 = scalar_lea.vmem %s3, %s217
        %p219 = pneg %p117
        %p220 = pneg %p114
        %p221 = pneg %p143
        %p222 = pneg %p140
        %s223 = sand.u32 %s130, 1
        %s224 = scalar_lea.sflag [#allocation3], %s223
        %s225 = sand.u32 %s130, 1
        %s226 = scalar_lea.vmem [#allocation2], %s225
        %p227 = scmp.lt.s32.totalorder %s18, 1
        %s228 = scalar_select %p227, %s18, 1
        %s229 = smul.addr %s228, 4
        %s230 = scalar_lea.vmem %s0, %s229
        %p231 = scmp.lt.s32.totalorder %s18, 1
        %s232 = scalar_select %p231, %s18, 1
        %s233 = smul.addr %s232, 2
        %s234 = smul.addr %s233, 8
        %s235 = scalar_lea.vmem %s1, %s234
        %p236 = scmp.lt.s32.totalorder %s18, 1
        %s237 = scalar_select %p236, %s18, 1
        %s238 = smul.addr %s237, 4
        %s239 = scalar_lea.vmem %s2, %s238
        %p240 = scmp.lt.s32.totalorder %s18, 1
        %s241 = scalar_select %p240, %s18, 1
        %s242 = scalar_lea.vmem %s3, %s241
        %v243 = vld [vmem:[%s230] sm:$0xf]
        %v244 = vld [vmem:[%s239] sm:$0xf]
        %v245 = vld [vmem:[%s235] sm:$0xff]
        %v246 = vld [vmem:[%s235 + $0x8] sm:$0x3]
        %v247 = vld [vmem:[%s242] sm:$0x1]
        %vm248 = vcmp.gt.s32.totalorder %v247, 0
        %v249 = vsel %vm248, 1, 0
        %v250 = vcvt.s32.f32 %v249
        %v251 = vsub.f32 %v243, %v244
        %v253 = vlaneseq
        %v254 = vshrl.u32 %v253, 7
        %v255 = vsub.s32 0, %v254
        %v256 = vrot.slane %v250, %v255
        %v258 = vmul.f32 %v251, %v256
        %v259 = vand.u32 2147483647, %v258
        %vm260 = vcmp.lt.f32.partialorder %v259, 1.0
        %v261 = vmul.f32 %v258, 0.5
        %v262 = vmul.f32 %v261, %v258
        %v263 = vsub.f32 %v259, 0.5
        %v264 = vsel %vm260, %v262, %v263
        %vm265 = vcmask 1043456
        %v266 = vsel %vm265, %v264, 0.0
        %267 = vadd.xlane.f32.xlu0 %v266
        %v268 = vpop.xlane.xlu0 %267
        %v269 = vrot.slane %v268, 4
        %v270 = vadd.f32 %v268, %v269
        %v271 = vrot.slane %v270, 2
        %v272 = vadd.f32 %v270, %v271
        %v273 = vrot.slane %v272, 1
        %v274 = vadd.f32 %v272, %v273
        %s275 = vtos %v274
        %vm276 = vcmask 1041408
        %v277 = vsel %vm276, %v246, -inf
        %v278 = vmax.f32 %v245, %v277
        %v279 = vrot.slane %v278, 4
        %v280 = vmax.f32 %v278, %v279
        %v281 = vrot.slane %v280, 2
        %v282 = vmax.f32 %v280, %v281
        %v283 = vrot.slane %v282, 1
        %v284 = vmax.f32 %v282, %v283
        %v285 = vsub.f32 %v245, %v284
        %v286 = vsub.f32 %v246, %v284
        %v287 = vmul.f32 %v285, 1.442695
        %v288 = vpow.pop %v287
        %v289 = vmul.f32 %v286, 1.442695
        %v290 = vpow.pop %v289
        %v291 = vsel %vm276, %v290, 0.0
        %v292 = vadd.f32 %v288, %v291
        %v293 = vrot.slane %v292, 4
        %v294 = vadd.f32 %v292, %v293
        %v295 = vrot.slane %v294, 2
        %v296 = vadd.f32 %v294, %v295
        %v297 = vrot.slane %v296, 1
        %v298 = vadd.f32 %v296, %v297
        %v299 = vlog2.pop %v298
        %v300 = vmul.f32 %v299, 0.6931472
        %v301 = vadd.f32 %v284, %v300
        %v302 = vlaneseq
        %v303 = vshrl.u32 %v302, 7
        %v304 = vadd.s32 %v303, 8
        %v305 = vlaneseq
        %v306 = vshrl.u32 %v305, 7
        %v307 = vsub.s32 0, %v306
        %v308 = vrot.slane %v247, %v307
        %vm309 = vcmp.eq.s32.totalorder %v303, %v308
        %vm310 = vcmp.eq.s32.totalorder %v304, %v308
        %v311 = vsel %vm309, 1, 0
        %v312 = vsel %vm310, 1, 0
        %v313 = vcvt.s32.f32 %v311
        %v314 = vcvt.s32.f32 %v312
        %v315 = vmul.f32 %v245, %v313
        %v316 = vmul.f32 %v246, %v314
        %v317 = vsel %vm276, %v316, 0.0
        %v318 = vadd.f32 %v315, %v317
        %v319 = vrot.slane %v318, 4
        %v320 = vadd.f32 %v318, %v319
        %v321 = vrot.slane %v320, 2
        %v322 = vadd.f32 %v320, %v321
        %v323 = vrot.slane %v322, 1
        %v324 = vadd.f32 %v322, %v323
        %v325 = vsub.f32 %v301, %v324
        %v326 = vsel %vm248, 0.0, %v325
        %v328 = vlaneseq
        %v329 = vshrl.u32 %v328, 7
        %v330 = vsub.s32 0, %v329
        %v331 = vrot.slane %v326, %v330
        %333 = vxpose.xlu0.b32.start [1/16] %v331, 128
        %334 = vxpose.xlu0.b32.cont [2/16] %v331, 128
        %335 = vxpose.xlu0.b32.cont [3/16] %v331, 128
        %336 = vxpose.xlu0.b32.cont [4/16] %v331, 128
        %337 = vxpose.xlu0.b32.cont [5/16] %v331, 128
        %338 = vxpose.xlu0.b32.cont [6/16] %v331, 128
        %339 = vxpose.xlu0.b32.cont [7/16] %v331, 128
        %340 = vxpose.xlu0.b32.cont [8/16] %v331, 128
        %341 = vxpose.xlu0.b32.cont [9/16] %v331, 128
        %342 = vxpose.xlu0.b32.cont [10/16] %v331, 128
        %343 = vxpose.xlu0.b32.cont [11/16] %v331, 128
        %344 = vxpose.xlu0.b32.cont [12/16] %v331, 128
        %345 = vxpose.xlu0.b32.cont [13/16] %v331, 128
        %346 = vxpose.xlu0.b32.cont [14/16] %v331, 128
        %347 = vxpose.xlu0.b32.cont [15/16] %v331, 128
        %348 = vxpose.xlu0.b32.end [16/16] %v331, 128
        %v349 = vpop.trf.xlu0
        %v350 = vpop.trf.xlu0
        %v351 = vpop.trf.xlu0
        %v352 = vpop.trf.xlu0
        %v353 = vpop.trf.xlu0
        %v354 = vpop.trf.xlu0
        %v355 = vpop.trf.xlu0
        %v356 = vpop.trf.xlu0
        %v357 = vpop.trf.xlu0
        %v358 = vpop.trf.xlu0
        %v359 = vpop.trf.xlu0
        %v360 = vpop.trf.xlu0
        %v361 = vpop.trf.xlu0
        %v362 = vpop.trf.xlu0
        %v363 = vpop.trf.xlu0
        %v364 = vpop.trf.xlu0
        %v365 = vadd.s32 %v303, 16
        %v366 = vadd.s32 %v303, 24
        %v367 = vadd.s32 %v303, 32
        %v368 = vadd.s32 %v303, 40
        %v369 = vadd.s32 %v303, 48
        %v370 = vadd.s32 %v303, 56
        %v371 = vadd.s32 %v303, 64
        %v372 = vadd.s32 %v303, 72
        %v373 = vadd.s32 %v303, 80
        %v374 = vadd.s32 %v303, 88
        %v375 = vadd.s32 %v303, 96
        %v376 = vadd.s32 %v303, 104
        %v377 = vadd.s32 %v303, 112
        %v378 = vadd.s32 %v303, 120
        %v379 = vlaneseq
        %v380 = vand.u32 %v379, 127
        %vm381 = vcmp.lt.s32.totalorder %v303, %v380
        %vm382 = vcmp.lt.s32.totalorder %v304, %v380
        %vm383 = vcmp.lt.s32.totalorder %v365, %v380
        %vm384 = vcmp.lt.s32.totalorder %v366, %v380
        %vm385 = vcmp.lt.s32.totalorder %v367, %v380
        %vm386 = vcmp.lt.s32.totalorder %v368, %v380
        %vm387 = vcmp.lt.s32.totalorder %v369, %v380
        %vm388 = vcmp.lt.s32.totalorder %v370, %v380
        %vm389 = vcmp.lt.s32.totalorder %v371, %v380
        %vm390 = vcmp.lt.s32.totalorder %v372, %v380
        %vm391 = vcmp.lt.s32.totalorder %v373, %v380
        %vm392 = vcmp.lt.s32.totalorder %v374, %v380
        %vm393 = vcmp.lt.s32.totalorder %v375, %v380
        %vm394 = vcmp.lt.s32.totalorder %v376, %v380
        %vm395 = vcmp.lt.s32.totalorder %v377, %v380
        %vm396 = vcmp.lt.s32.totalorder %v378, %v380
        %vm397 = vcmp.gt.f32.partialorder %v349, %v331
        %vm398 = vcmp.gt.f32.partialorder %v350, %v331
        %vm399 = vcmp.gt.f32.partialorder %v351, %v331
        %vm400 = vcmp.gt.f32.partialorder %v352, %v331
        %vm401 = vcmp.gt.f32.partialorder %v353, %v331
        %vm402 = vcmp.gt.f32.partialorder %v354, %v331
        %vm403 = vcmp.gt.f32.partialorder %v355, %v331
        %vm404 = vcmp.gt.f32.partialorder %v356, %v331
        %vm405 = vcmp.gt.f32.partialorder %v357, %v331
        %vm406 = vcmp.gt.f32.partialorder %v358, %v331
        %vm407 = vcmp.gt.f32.partialorder %v359, %v331
        %vm408 = vcmp.gt.f32.partialorder %v360, %v331
        %vm409 = vcmp.gt.f32.partialorder %v361, %v331
        %vm410 = vcmp.gt.f32.partialorder %v362, %v331
        %vm411 = vcmp.gt.f32.partialorder %v363, %v331
        %vm412 = vcmp.gt.f32.partialorder %v364, %v331
        %vm413 = vcmp.eq.f32.partialorder %v349, %v331
        %vm414 = vcmp.eq.f32.partialorder %v350, %v331
        %vm415 = vcmp.eq.f32.partialorder %v351, %v331
        %vm416 = vcmp.eq.f32.partialorder %v352, %v331
        %vm417 = vcmp.eq.f32.partialorder %v353, %v331
        %vm418 = vcmp.eq.f32.partialorder %v354, %v331
        %vm419 = vcmp.eq.f32.partialorder %v355, %v331
        %vm420 = vcmp.eq.f32.partialorder %v356, %v331
        %vm421 = vcmp.eq.f32.partialorder %v357, %v331
        %vm422 = vcmp.eq.f32.partialorder %v358, %v331
        %vm423 = vcmp.eq.f32.partialorder %v359, %v331
        %vm424 = vcmp.eq.f32.partialorder %v360, %v331
        %vm425 = vcmp.eq.f32.partialorder %v361, %v331
        %vm426 = vcmp.eq.f32.partialorder %v362, %v331
        %vm427 = vcmp.eq.f32.partialorder %v363, %v331
        %vm428 = vcmp.eq.f32.partialorder %v364, %v331
        %vm429 = vmand %vm413, %vm381
        %vm430 = vmand %vm414, %vm382
        %vm431 = vmand %vm415, %vm383
        %vm432 = vmand %vm416, %vm384
        %vm433 = vmand %vm417, %vm385
        %vm434 = vmand %vm418, %vm386
        %vm435 = vmand %vm419, %vm387
        %vm436 = vmand %vm420, %vm388
        %vm437 = vmand %vm421, %vm389
        %vm438 = vmand %vm422, %vm390
        %vm439 = vmand %vm423, %vm391
        %vm440 = vmand %vm424, %vm392
        %vm441 = vmand %vm425, %vm393
        %vm442 = vmand %vm426, %vm394
        %vm443 = vmand %vm427, %vm395
        %vm444 = vmand %vm428, %vm396
        %vm445 = vmor %vm397, %vm429
        %vm446 = vmor %vm398, %vm430
        %vm447 = vmor %vm399, %vm431
        %vm448 = vmor %vm400, %vm432
        %vm449 = vmor %vm401, %vm433
        %vm450 = vmor %vm402, %vm434
        %vm451 = vmor %vm403, %vm435
        %vm452 = vmor %vm404, %vm436
        %vm453 = vmor %vm405, %vm437
        %vm454 = vmor %vm406, %vm438
        %vm455 = vmor %vm407, %vm439
        %vm456 = vmor %vm408, %vm440
        %vm457 = vmor %vm409, %vm441
        %vm458 = vmor %vm410, %vm442
        %vm459 = vmor %vm411, %vm443
        %vm460 = vmor %vm412, %vm444
        %v461 = vsel %vm445, 1, 0
        %v462 = vsel %vm446, 1, 0
        %v463 = vsel %vm447, 1, 0
        %v464 = vsel %vm448, 1, 0
        %v465 = vsel %vm449, 1, 0
        %v466 = vsel %vm450, 1, 0
        %v467 = vsel %vm451, 1, 0
        %v468 = vsel %vm452, 1, 0
        %v469 = vsel %vm453, 1, 0
        %v470 = vsel %vm454, 1, 0
        %v471 = vsel %vm455, 1, 0
        %v472 = vsel %vm456, 1, 0
        %v473 = vsel %vm457, 1, 0
        %v474 = vsel %vm458, 1, 0
        %v475 = vsel %vm459, 1, 0
        %v476 = vsel %vm460, 1, 0
        %v477 = vcvt.s32.f32 %v461
        %v478 = vcvt.s32.f32 %v462
        %v479 = vcvt.s32.f32 %v463
        %v480 = vcvt.s32.f32 %v464
        %v481 = vcvt.s32.f32 %v465
        %v482 = vcvt.s32.f32 %v466
        %v483 = vcvt.s32.f32 %v467
        %v484 = vcvt.s32.f32 %v468
        %v485 = vcvt.s32.f32 %v469
        %v486 = vcvt.s32.f32 %v470
        %v487 = vcvt.s32.f32 %v471
        %v488 = vcvt.s32.f32 %v472
        %v489 = vcvt.s32.f32 %v473
        %v490 = vcvt.s32.f32 %v474
        %v491 = vcvt.s32.f32 %v475
        %v492 = vcvt.s32.f32 %v476
        %493 = vmatprep.subr.mxu0 0.0
        %494 = vmatpush1.msra.mxu0 %v492
        %495 = vmatprep.subr.mxu0 0.0
        %496 = vmatpush1.msra.mxu0 %v491
        %497 = vmatprep.subr.mxu0 0.0
        %498 = vmatpush1.msra.mxu0 %v490
        %499 = vmatprep.subr.mxu0 0.0
        %500 = vmatpush1.msra.mxu0 %v489
        %501 = vmatprep.subr.mxu0 0.0
        %502 = vmatpush1.msra.mxu0 %v488
        %503 = vmatprep.subr.mxu0 0.0
        %504 = vmatpush1.msra.mxu0 %v487
        %505 = vmatprep.subr.mxu0 0.0
        %506 = vmatpush1.msra.mxu0 %v486
        %507 = vmatprep.subr.mxu0 0.0
        %508 = vmatpush1.msra.mxu0 %v485
        %509 = vmatprep.subr.mxu0 0.0
        %510 = vmatpush1.msra.mxu0 %v484
        %511 = vmatprep.subr.mxu0 0.0
        %512 = vmatpush1.msra.mxu0 %v483
        %513 = vmatprep.subr.mxu0 0.0
        %514 = vmatpush1.msra.mxu0 %v482
        %515 = vmatprep.subr.mxu0 0.0
        %516 = vmatpush1.msra.mxu0 %v481
        %517 = vmatprep.subr.mxu0 0.0
        %518 = vmatpush1.msra.mxu0 %v480
        %519 = vmatprep.subr.mxu0 0.0
        %520 = vmatpush1.msra.mxu0 %v479
        %521 = vmatprep.subr.mxu0 0.0
        %522 = vmatpush1.msra.mxu0 %v478
        %523 = vmatprep.subr.mxu0 0.0
        %524 = vmatpush1.msra.mxu0 %v477
        %525 = vmatprep.subr.mxu0 0.0
        %526 = vmatpush2.msra.mxu0 0.0
        %527 = vmatprep.subr.mxu0 0.0
        %528 = vmatpush2.msra.mxu0 0.0
        %529 = vmatprep.subr.mxu0 0.0
        %530 = vmatpush2.msra.mxu0 0.0
        %531 = vmatprep.subr.mxu0 0.0
        %532 = vmatpush2.msra.mxu0 0.0
        %533 = vmatprep.subr.mxu0 0.0
        %534 = vmatpush2.msra.mxu0 0.0
        %535 = vmatprep.subr.mxu0 0.0
        %536 = vmatpush2.msra.mxu0 0.0
        %537 = vmatprep.subr.mxu0 0.0
        %538 = vmatpush2.msra.mxu0 0.0
        %539 = vmatprep.subr.mxu0 0.0
        %540 = vmatpush2.msra.mxu0 0.0
        %541 = vmatprep.subr.mxu0 0.0
        %542 = vmatpush2.msra.mxu0 0.0
        %543 = vmatprep.subr.mxu0 0.0
        %544 = vmatpush2.msra.mxu0 0.0
        %545 = vmatprep.subr.mxu0 0.0
        %546 = vmatpush2.msra.mxu0 0.0
        %547 = vmatprep.subr.mxu0 0.0
        %548 = vmatpush2.msra.mxu0 0.0
        %549 = vmatprep.subr.mxu0 0.0
        %550 = vmatpush2.msra.mxu0 0.0
        %551 = vmatprep.subr.mxu0 0.0
        %552 = vmatpush2.msra.mxu0 0.0
        %553 = vmatprep.subr.mxu0 0.0
        %554 = vmatpush2.msra.mxu0 0.0
        %555 = vmatprep.subr.mxu0 0.0
        %556 = vmatpush2.msra.mxu0 0.0
        %557 = vmatprep.mubr.f32.mxu0 0.0
        %558 = vmatmul.mubr.f32.gmra.mxu0 1.0
        %v559 = vpop.f32.mrf.mxu0
        %v560 = vadd.f32 0.0, %v559
        %v561 = vpop.f32.mrf.mxu0
        %562 = vdwg.mxu0
        %vm563 = vcmask 1040384
        %v564 = vsel %vm563, %v250, 0.0
        %565 = vadd.xlane.f32.xlu0 %v564
        %v566 = vpop.xlane.xlu0 %565
        %v567 = vrot.slane %v566, 4
        %v568 = vadd.f32 %v566, %v567
        %v569 = vrot.slane %v568, 2
        %v570 = vadd.f32 %v568, %v569
        %v571 = vrot.slane %v570, 1
        %v572 = vadd.f32 %v570, %v571
        %s573 = vtos %v572
        %s574 = smul.f32 %s573, 3.0
        %s575 = smin.f32 %s574, 127.0
        %v576 = vstv %s575
        %vm577 = vcmp.lt.f32.partialorder %v560, %v576
        %vm578 = vmor %vm248, %vm577
        %v579 = vsel %vm578, %v325, 0.0
        %v580 = vsel %vm563, %v579, 0.0
        %581 = vadd.xlane.f32.xlu0 %v580
        %v582 = vpop.xlane.xlu0 %581
        %v583 = vrot.slane %v582, 4
        %v584 = vadd.f32 %v582, %v583
        %v585 = vrot.slane %v584, 2
        %v586 = vadd.f32 %v584, %v585
        %v587 = vrot.slane %v586, 1
        %v588 = vadd.f32 %v586, %v587
        %s589 = vtos %v588
        %vm590 = vcmp.eq.s32.totalorder %v380, 0
        %v591 = vstv %s275
        %v592 = vsel %vm590, %v591, 0.0
        %vm593 = vcmp.eq.s32.totalorder %v380, 1
        %v594 = vstv %s589
        %v595 = vsel %vm593, %v594, 0.0
        %v596 = vadd.f32 %v592, %v595
        %vm597 = vcmp.eq.s32.totalorder %v380, 2
        %v598 = vstv %s573
        %v599 = vsel %vm597, %v598, 0.0
        %v600 = vadd.f32 %v596, %v599
        %601 = vst [vmem:[%s226] sm:$0x1] %v600
        %s602 = sand.u32 %s130, 1
        %s603 = scalar_lea.sflag [#allocation3], %s602
        %s604 = sand.u32 %s130, 1
        %s605 = scalar_lea.vmem [#allocation2], %s604
        // Predicated region
        $region37: #{tpu_custom_call.1} parent=35 // pred_check
          %p606 = pneg %p140
        $region38: #{tpu_custom_call.1} parent=35 // pred_check_branch
          %608 = sbr.rel (%p606) target = $region40
        $region39: #{tpu_custom_call.1} parent=35 // pred_region
          %s610 = ssub.s32 16, 16
          %611 = vsyncadd %s603, %s610
          %s612 = smul.addr %s18, 16
          %s613 = scalar_lea.hbm %s4, %s612
          %s615 = sshll.u32 %s605, 4
          %s616 = int_to_ptr.vmem [resolvable:$true] %s615
          %618 = dma.vmem_to_hbm [thread:$0]  %s616, 16, %s613, %s603
        $region40: #{tpu_custom_call.1} parent=35 // pred_fallthru
          _
      $region36: #{tpu_custom_call.1} parent=5 // pred_fallthru
        _
      %p619 = scmp.le.s32.totalorder 2, %s13
      // Predicated region
      $region41: #{tpu_custom_call.1} parent=5 // pred_check
        %p620 = pneg %p619
      $region42: #{tpu_custom_call.1} parent=5 // pred_check_branch
        %622 = sbr.rel (%p620) target = $region44
      $region43: #{tpu_custom_call.1} parent=5 // pred_region
        %s623 = ssub.s32 %s13, 2
        // Predicated region
        $region45: #{tpu_custom_call.1} parent=43 // pred_check
          %p624 = pneg %p146
        $region46: #{tpu_custom_call.1} parent=43 // pred_check_branch
          %626 = sbr.rel (%p624) target = $region48
        $region47: #{tpu_custom_call.1} parent=43 // pred_region
          %s627 = sand.u32 %s131, 1
          %s628 = scalar_lea.sflag [#allocation3], %s627
          %s629 = sand.u32 %s131, 1
          %s630 = scalar_lea.vmem [#allocation2], %s629
          %631 = dma.done %s628, 16
        $region48: #{tpu_custom_call.1} parent=43 // pred_fallthru
          _
      $region44: #{tpu_custom_call.1} parent=5 // pred_fallthru
        _
    $region6: #{tpu_custom_call.1} parent=1 // loop_footer
      %s17 = sadd.s32 1, %s13
    $region7: #{tpu_custom_call.1} parent=1 // loop_footer_branch
      %12 = sbr.rel target = $region3
    $region8: #{tpu_custom_call.1} parent=1 // loop_exit
      _
    %632 = vsyncpa [#allocation3], 1
    %s633 = scalar_lea.sflag [#allocation3], 1
    %634 = vsyncpa %s633, 1

</llo_original>
